<compile_context>
chip_gen: v6e
topology: v6e:2x2x1
jax: 0.10.0
libtpu: 0.0.40
codegen_flags: <defaults>
</compile_context>

<pallas_src>
import functools

import jax
import jax.numpy as jnp
from jax.experimental import pallas as pl
from jax.experimental.pallas import tpu as pltpu

LANE = 128        # feature dims padded to lane-width multiples (lane-dense vst)
SUBLANE = 8       # batch tiles padded to sublane-width multiples
MAX_TILE_B = 512  # >=512 rows per grid step once the batch is large enough
                  # (prefer 256-multiples where true dims allow: v6e/v7x MXU is 256x256)


def _round_up(x, m):
    return ((x + m - 1) // m) * m


def _cdiv(a, b):
    return -(-a // b)


@functools.lru_cache(maxsize=1)
def _vmem_budget_bytes():
    """Generation-aware VMEM budget: ~80% of this chip's per-core VMEM."""
    cap = 64 << 20  # conservative fallback = v7x per-TensorCore VMEM
    try:
        info = pltpu.get_tpu_info()
        cap = int(getattr(info, "vmem_capacity_bytes", cap) or cap)
    except Exception:
        pass
    return int(cap * 0.8)  # headroom for Mosaic internal scratch / spills


def _vmem_need_bytes(tile_b, inp, tile_h, cp, mxu_bytes, out_bytes):
    """Conservative VMEM estimate: every pipelined operand double-buffered."""
    return (
        2 * mxu_bytes * tile_b * inp                       # streamed x tiles
        + 2 * mxu_bytes * (inp * tile_h + tile_h * cp)     # W1 / W2 tiles
        + 2 * 4 * (tile_h + cp)                            # b1 / b2 tiles (f32)
        + 2 * out_bytes * tile_b * cp                      # streamed output tiles
        + 4 * tile_b * cp                                  # f32 accumulator scratch
        + 4 * tile_b * (tile_h + cp)                       # in-body f32 intermediates
    )


def ffnn_kernel(x_ref, w1_ref, b1_ref, w2_ref, b2_ref, o_ref, acc_ref):
    j = pl.program_id(1)  # hidden-tile (reduction) axis

    @pl.when(j == 0)
    def _init():
        acc_ref[...] = jnp.zeros_like(acc_ref)

    # fc1 slice on the MXU (f32 accumulate); bias + ReLU on the VPU in f32.
    h = jnp.dot(x_ref[...], w1_ref[...], preferred_element_type=jnp.float32)
    h = jnp.maximum(h + b1_ref[...], 0.0)

    # fc2 partial product, accumulated in f32 across hidden tiles.
    acc_ref[...] += jnp.dot(h.astype(w2_ref.dtype), w2_ref[...],
                            preferred_element_type=jnp.float32)

    @pl.when(j == pl.num_programs(1) - 1)
    def _finalize():
        o_ref[...] = (acc_ref[...] + b2_ref[...]).astype(o_ref.dtype)


def prepare_params(w1, b1, w2, b2, mxu_dtype=jnp.bfloat16):
    """Pad (and cast) the weights ONCE, outside the per-call jitted path.

    w1: (In, H); b1: (H,)/(1,H); w2: (H, C); b2: (C,)/(1,C).
    """
    In, H = w1.shape
    C = w2.shape[1]
    Inp, Hp, Cp = _round_up(In, LANE), _round_up(H, LANE), _round_up(C, LANE)
    w1p = jnp.pad(w1.astype(mxu_dtype), ((0, Inp - In), (0, Hp - H)))
    b1p = jnp.pad(b1.reshape(1, H).astype(jnp.float32), ((0, 0), (0, Hp - H)))
    w2p = jnp.pad(w2.astype(mxu_dtype), ((0, Hp - H), (0, Cp - C)))
    b2p = jnp.pad(b2.reshape(1, C).astype(jnp.float32), ((0, 0), (0, Cp - C)))
    return {"w1": w1p, "b1": b1p, "w2": w2p, "b2": b2p,
            "in_features": In, "num_classes": C}


@functools.partial(jax.jit,
                   static_argnames=("in_features", "num_classes", "hidden_block"))
def _ffnn_forward_padded(x, w1p, b1p, w2p, b2p, *, in_features, num_classes,
                         hidden_block=None):
    B, In = x.shape
    assert In == in_features, "x feature dim does not match prepared params"
    Inp, Hp = w1p.shape
    Cp = w2p.shape[1]
    out_dtype = x.dtype
    mxu_dtype = w1p.dtype
    mxu_bytes = jnp.dtype(mxu_dtype).itemsize
    out_bytes = jnp.dtype(out_dtype).itemsize

    # ---- batch tiling: balanced tiles (minimal zero-row padding); force >=2
    # tiles once B is big enough so the "parallel" axis shards across both
    # TensorCores on v7x (neutral on single-TC v5e/v6e).
    n_b = max(1, _cdiv(B, MAX_TILE_B))
    if B >= 2 * SUBLANE:
        n_b = max(n_b, 2)
    tile_b = _round_up(_cdiv(B, n_b), SUBLANE)
    Bp = _round_up(B, tile_b)
    grid_b = Bp // tile_b

    # ---- hidden tiling: keep whole weights VMEM-resident if they fit the
    # generation-aware budget, otherwise stream H-slices and accumulate.
    budget = _vmem_budget_bytes()
    if hidden_block is not None:
        tile_h = hidden_block
    else:
        tile_h = LANE
        n_lane_blocks = Hp // LANE
        for n_h in range(1, n_lane_blocks + 1):
            if n_lane_blocks % n_h:
                continue
            cand = Hp // n_h
            if _vmem_need_bytes(tile_b, Inp, cand, Cp, mxu_bytes, out_bytes) <= budget:
                tile_h = cand
                break
    assert Hp % tile_h == 0 and tile_h % LANE == 0
    grid_h = Hp // tile_h

    # Only x is padded per call (weights were padded once in prepare_params).
    xp = jnp.pad(x, ((0, Bp - B), (0, Inp - In))).astype(mxu_dtype)

    flops = 2 * Bp * Inp * Hp + 2 * Bp * Hp * Cp
    bytes_accessed = (
        xp.size * mxu_bytes
        + grid_b * (w1p.size + w2p.size) * mxu_bytes   # worst case: re-streamed per batch tile
        + (b1p.size + b2p.size) * 4
        + Bp * Cp * out_bytes)

    out_p = pl.pallas_call(
        ffnn_kernel,
        out_shape=jax.ShapeDtypeStruct((Bp, Cp), out_dtype),
        grid=(grid_b, grid_h),
        in_specs=[
            pl.BlockSpec((tile_b, Inp), lambda i, j: (i, 0)),   # x: streamed over batch
            pl.BlockSpec((Inp, tile_h), lambda i, j: (0, j)),   # W1 slice (resident if grid_h==1)
            pl.BlockSpec((1, tile_h), lambda i, j: (0, j)),     # b1 slice
            pl.BlockSpec((tile_h, Cp), lambda i, j: (j, 0)),    # W2 slice
            pl.BlockSpec((1, Cp), lambda i, j: (0, 0)),         # b2
        ],
        out_specs=pl.BlockSpec((tile_b, Cp), lambda i, j: (i, 0)),
        scratch_shapes=[pltpu.VMEM((tile_b, Cp), jnp.float32)],
        compiler_params=pltpu.CompilerParams(
            dimension_semantics=("parallel", "arbitrary"),
            vmem_limit_bytes=budget,
        ),
        cost_estimate=pl.CostEstimate(
            flops=int(flops), transcendentals=0,
            bytes_accessed=int(bytes_accessed)),
    )(xp, w1p, b1p, w2p, b2p)

    return out_p[:B, :num_classes]


def ffnn_forward(x, params, hidden_block=None):
    return _ffnn_forward_padded(
        x, params["w1"], params["b1"], params["w2"], params["b2"],
        in_features=params["in_features"], num_classes=params["num_classes"],
        hidden_block=hidden_block)


def init_params(key, input_size, hidden_size, num_classes, dtype=jnp.float32):
    # Deterministic init matching nn.Linear's U(-1/sqrt(fan_in), 1/sqrt(fan_in)).
    k1, k2, k3, k4 = jax.random.split(key, 4)
    lim1 = 1.0 / (input_size ** 0.5)
    lim2 = 1.0 / (hidden_size ** 0.5)
    w1 = jax.random.uniform(k1, (input_size, hidden_size), dtype, -lim1, lim1)
    b1 = jax.random.uniform(k2, (1, hidden_size), dtype, -lim1, lim1)
    w2 = jax.random.uniform(k3, (hidden_size, num_classes), dtype, -lim2, lim2)
    b2 = jax.random.uniform(k4, (1, num_classes), dtype, -lim2, lim2)
    return w1, b1, w2, b2


if __name__ == "__main__":
    batch, input_size, hidden_size, num_classes = 8, 32, 64, 16

    key = jax.random.PRNGKey(0)
    kx, kp = jax.random.split(key)
    x = jax.random.normal(kx, (batch, input_size), jnp.float32)
    w1, b1, w2, b2 = init_params(kp, input_size, hidden_size, num_classes)
    ref = jnp.maximum(x @ w1 + b1, 0.0) @ w2 + b2

    # 1) f32 MXU path (exact): weights VMEM-resident, single hidden tile.
    out_f32 = ffnn_forward(x, prepare_params(w1, b1, w2, b2, mxu_dtype=jnp.float32))
    jax.block_until_ready(out_f32)
    assert out_f32.shape == (batch, num_classes)
    assert jnp.allclose(out_f32, ref, atol=1e-5, rtol=1e-5)

    # 2) Default bf16 MXU path (fast on v5e/v6e/v7x): looser tolerance.
    out_bf16 = ffnn_forward(x, prepare_params(w1, b1, w2, b2))
    jax.block_until_ready(out_bf16)
    assert out_bf16.shape == (batch, num_classes)
    assert jnp.allclose(out_bf16, ref, atol=5e-2, rtol=5e-2)

    # 3) Exercise the H-tiled accumulator path (used when weights exceed the
    #    VMEM budget, e.g. large hidden sizes on v7x) + multi-tile batch axis.
    batch3, in3, hid3, cls3 = 24, 32, 256, 16
    x3 = jax.random.normal(jax.random.PRNGKey(1), (batch3, in3), jnp.float32)
    w1c, b1c, w2c, b2c = init_params(jax.random.PRNGKey(2), in3, hid3, cls3)
    ref3 = jnp.maximum(x3 @ w1c + b1c, 0.0) @ w2c + b2c
    out3 = ffnn_forward(
        x3, prepare_params(w1c, b1c, w2c, b2c, mxu_dtype=jnp.float32),
        hidden_block=128)  # force 2 hidden tiles -> accumulator/pl.when path
    jax.block_until_ready(out3)
    assert out3.shape == (batch3, cls3)
    assert jnp.allclose(out3, ref3, atol=1e-5, rtol=1e-5)

    print("KERNEL_OK")
</pallas_src>

<mosaic_0001>
module attributes {stable_mosaic.version = 11 : i64} {
  func.func @ffnn_kernel(%arg0: i32, %arg1: i32, %arg2: memref<8x128xf32, #tpu.memory_space<vmem>>, %arg3: memref<128x128xf32, #tpu.memory_space<vmem>>, %arg4: memref<1x128xf32, #tpu.memory_space<vmem>>, %arg5: memref<128x128xf32, #tpu.memory_space<vmem>>, %arg6: memref<1x128xf32, #tpu.memory_space<vmem>>, %arg7: memref<8x128xf32, #tpu.memory_space<vmem>>, %arg8: memref<8x128xf32, #tpu.memory_space<vmem>>) attributes {dimension_semantics = [#tpu.dimension_semantics<parallel>, #tpu.dimension_semantics<arbitrary>], iteration_bounds = array<i64: 1, 1>, scalar_prefetch = 0 : i64, scratch_operands = 1 : i64, tpu.core_type = #tpu.core_type<tc>, window_params = [{transform_indices = @transform_0, window_bounds = array<i64: 8, 128>}, {transform_indices = @transform_1, window_bounds = array<i64: 128, 128>}, {transform_indices = @transform_2, window_bounds = array<i64: 1, 128>}, {transform_indices = @transform_3, window_bounds = array<i64: 128, 128>}, {pipeline_mode = #tpu.pipeline_mode<synchronous>, transform_indices = @transform_4, window_bounds = array<i64: 1, 128>}, {transform_indices = @transform_5, window_bounds = array<i64: 8, 128>}]} {
    %c0_i32 = arith.constant 0 : i32
    %0 = arith.cmpi eq, %arg1, %c0_i32 : i32
    %1 = arith.extui %0 : i1 to i32
    %c0_i32_0 = arith.constant 0 : i32
    %2 = arith.cmpi ne, %1, %c0_i32_0 : i32
    scf.if %2 {
      %cst_16 = arith.constant 0.000000e+00 : f32
      %19 = vector.broadcast %cst_16 : f32 to vector<8x128xf32>
      %c0_17 = arith.constant 0 : index
      %c0_18 = arith.constant 0 : index
      %20 = vector.load %arg8[%c0_17, %c0_18] : memref<8x128xf32, #tpu.memory_space<vmem>>, vector<8x128xf32>
      tpu.vector_store %arg8[%c0_17, %c0_18], %19 {strides = array<i32>} : memref<8x128xf32, #tpu.memory_space<vmem>>, vector<8x128xf32>,
    } else {
    }
    %c0 = arith.constant 0 : index
    %c0_1 = arith.constant 0 : index
    %3 = vector.load %arg2[%c0, %c0_1] : memref<8x128xf32, #tpu.memory_space<vmem>>, vector<8x128xf32>
    %c0_2 = arith.constant 0 : index
    %c0_3 = arith.constant 0 : index
    %4 = vector.load %arg3[%c0_2, %c0_3] : memref<128x128xf32, #tpu.memory_space<vmem>>, vector<128x128xf32>
    %cst = arith.constant dense<0.000000e+00> : vector<8x128xf32>
    %5 = tpu.matmul %3, %4, %cst {dimension_numbers = #tpu.dot_dimension_numbers<[1], [0], [0], [1], [0, 0, 1, 1], [], []>} : vector<8x128xf32>, vector<128x128xf32>, vector<8x128xf32> -> vector<8x128xf32>
    %c0_4 = arith.constant 0 : index
    %c0_5 = arith.constant 0 : index
    %6 = vector.load %arg4[%c0_4, %c0_5] : memref<1x128xf32, #tpu.memory_space<vmem>>, vector<1x128xf32>
    %7 = vector.broadcast %6 : vector<1x128xf32> to vector<8x128xf32>
    %8 = arith.addf %5, %7 : vector<8x128xf32>
    %cst_6 = arith.constant 0.000000e+00 : f32
    %9 = vector.broadcast %cst_6 : f32 to vector<8x128xf32>
    %10 = arith.maximumf %8, %9 : vector<8x128xf32>
    %c0_7 = arith.constant 0 : index
    %c0_8 = arith.constant 0 : index
    %11 = vector.load %arg8[%c0_7, %c0_8] : memref<8x128xf32, #tpu.memory_space<vmem>>, vector<8x128xf32>
    %c0_9 = arith.constant 0 : index
    %c0_10 = arith.constant 0 : index
    %12 = vector.load %arg5[%c0_9, %c0_10] : memref<128x128xf32, #tpu.memory_space<vmem>>, vector<128x128xf32>
    %cst_11 = arith.constant dense<0.000000e+00> : vector<8x128xf32>
    %13 = tpu.matmul %10, %12, %cst_11 {dimension_numbers = #tpu.dot_dimension_numbers<[1], [0], [0], [1], [0, 0, 1, 1], [], []>} : vector<8x128xf32>, vector<128x128xf32>, vector<8x128xf32> -> vector<8x128xf32>
    %14 = arith.addf %11, %13 : vector<8x128xf32>
    %c0_12 = arith.constant 0 : index
    %c0_13 = arith.constant 0 : index
    %15 = vector.load %arg8[%c0_12, %c0_13] : memref<8x128xf32, #tpu.memory_space<vmem>>, vector<8x128xf32>
    tpu.vector_store %arg8[%c0_12, %c0_13], %14 {strides = array<i32>} : memref<8x128xf32, #tpu.memory_space<vmem>>, vector<8x128xf32>,
    %c0_i32_14 = arith.constant 0 : i32
    %16 = arith.cmpi eq, %arg1, %c0_i32_14 : i32
    %17 = arith.extui %16 : i1 to i32
    %c0_i32_15 = arith.constant 0 : i32
    %18 = arith.cmpi ne, %17, %c0_i32_15 : i32
    scf.if %18 {
      %c0_16 = arith.constant 0 : index
      %c0_17 = arith.constant 0 : index
      %19 = vector.load %arg8[%c0_16, %c0_17] : memref<8x128xf32, #tpu.memory_space<vmem>>, vector<8x128xf32>
      %c0_18 = arith.constant 0 : index
      %c0_19 = arith.constant 0 : index
      %20 = vector.load %arg6[%c0_18, %c0_19] : memref<1x128xf32, #tpu.memory_space<vmem>>, vector<1x128xf32>
      %21 = vector.broadcast %20 : vector<1x128xf32> to vector<8x128xf32>
      %22 = arith.addf %19, %21 : vector<8x128xf32>
      %c0_20 = arith.constant 0 : index
      %c0_21 = arith.constant 0 : index
      %23 = vector.load %arg7[%c0_20, %c0_21] : memref<8x128xf32, #tpu.memory_space<vmem>>, vector<8x128xf32>
      tpu.vector_store %arg7[%c0_20, %c0_21], %22 {strides = array<i32>} : memref<8x128xf32, #tpu.memory_space<vmem>>, vector<8x128xf32>,
    } else {
    }
    return
  }
  func.func @transform_0(%arg0: i32, %arg1: i32) -> (i32, i32) {
    %c0_i32 = arith.constant 0 : i32
    %c0_i32_0 = arith.constant 0 : i32
    return %arg0, %c0_i32 : i32, i32
  }
  func.func @transform_1(%arg0: i32, %arg1: i32) -> (i32, i32) {
    %c0_i32 = arith.constant 0 : i32
    %c0_i32_0 = arith.constant 0 : i32
    return %c0_i32, %arg1 : i32, i32
  }
  func.func @transform_2(%arg0: i32, %arg1: i32) -> (i32, i32) {
    %c0_i32 = arith.constant 0 : i32
    %c0_i32_0 = arith.constant 0 : i32
    return %c0_i32, %arg1 : i32, i32
  }
  func.func @transform_3(%arg0: i32, %arg1: i32) -> (i32, i32) {
    %c0_i32 = arith.constant 0 : i32
    %c0_i32_0 = arith.constant 0 : i32
    return %arg1, %c0_i32 : i32, i32
  }
  func.func @transform_4(%arg0: i32, %arg1: i32) -> (i32, i32) {
    %c0_i32 = arith.constant 0 : i32
    %c0_i32_0 = arith.constant 0 : i32
    %c0_i32_1 = arith.constant 0 : i32
    return %c0_i32, %c0_i32_0 : i32, i32
  }
  func.func @transform_5(%arg0: i32, %arg1: i32) -> (i32, i32) {
    %c0_i32 = arith.constant 0 : i32
    %c0_i32_0 = arith.constant 0 : i32
    return %arg0, %c0_i32 : i32, i32
  }
}

</mosaic_0001>

<llo_original>
// kernel: _ffnn_forward_padded.1
$region0: #{_ffnn_forward_padded.1}
  #allocation0 [shape = 'u32[]', space=smem, size = 0x4, offset = 0x4, fixed_abs, tag = 'smem constant byte address 0x4 - core index']
  #allocation1 [shape = 'u32[144,128]{1,0:T(1,128)}', space=vmem, size = 0x12000, scoped, tag = 'internal scratch']
  #allocation2 [shape = 'f32[8,128]{1,0:T(8,128)}', space=vmem, size = 0x1000, scoped, tag = 'scratch operand']
  %s0 = inlined_call_operand.vmem [shape: f32[8,128], index: 0, kind: input, shape index: {}]
  %s1 = inlined_call_operand.hbm [shape: f32[128,128], index: 1, kind: input, shape index: {}]
  %s2 = inlined_call_operand.vmem [shape: f32[1,128], index: 2, kind: input, shape index: {}]
  %s3 = inlined_call_operand.hbm [shape: f32[128,128], index: 3, kind: input, shape index: {}]
  %s4 = inlined_call_operand.vmem [shape: f32[1,128], index: 4, kind: input, shape index: {}]
  %s5 = inlined_call_operand.hbm [shape: f32[8,128], index: 5, kind: output, shape index: {}]
  %s6 = sld [smem:[#allocation0]]
  $region46: #{_ffnn_forward_padded.1} parent=0
    _
  %s8 = ssub.s32 1, %s6
  %s9 = scalar_select 0, %s8, %s6
  $region1: #{_ffnn_forward_padded.1} parent=0
    #allocation3 [shape = 'u8[65536]{0}', space=vmem, size = 0x10000, scoped, tag = 'input window, operand 1, single buffered']
    #allocation4 [shape = 's32[1]{0}', space=sflag, size = 0x4, scoped, tag = 'scoped memory for _ffnn_forward_padded.1']
    #allocation5 [shape = 's32[1]{0}', space=sflag, size = 0x4, scoped, tag = 'scoped memory for _ffnn_forward_padded.1']
    #allocation6 [shape = 'u8[65536]{0}', space=vmem, size = 0x10000, scoped, tag = 'input window, operand 3, single buffered']
    #allocation7 [shape = 's32[1]{0}', space=sflag, size = 0x4, scoped, tag = 'scoped memory for _ffnn_forward_padded.1']
    #allocation8 [shape = 'u8[4096]{0}', space=vmem, size = 0x1000, scoped, tag = 'output window, operand 0, single buffered']
    %10 = vsyncpa [#allocation4], 0
    %11 = vsyncpa [#allocation7], 0
    %12 = vsyncpa [#allocation5], 0
    // Predicated region
    $region2: #{_ffnn_forward_padded.1} parent=1 // pred_check
      _
    $region3: #{_ffnn_forward_padded.1} parent=1 // pred_check_branch
      %14 = sbr.rel (0) target = $region5
    $region4: #{_ffnn_forward_padded.1} parent=1 // pred_region
      _
    $region5: #{_ffnn_forward_padded.1} parent=1 // pred_fallthru
      _
    // Predicated region
    $region6: #{_ffnn_forward_padded.1} parent=1 // pred_check
      _
    $region7: #{_ffnn_forward_padded.1} parent=1 // pred_check_branch
      %16 = sbr.rel (0) target = $region9
    $region8: #{_ffnn_forward_padded.1} parent=1 // pred_region
      %s18 = ssub.s32 2048, 2048
      %19 = vsyncadd [#allocation4], %s18
      %s20 = sshll.u32 [#allocation3], 4
      %s21 = int_to_ptr.vmem [resolvable:$true] %s20
      %26 = dma.hbm_to_vmem [thread:$0]  %s1, 2048, %s21, [#allocation4], 128, 128, 8
    $region9: #{_ffnn_forward_padded.1} parent=1 // pred_fallthru
      _
    // Predicated region
    $region10: #{_ffnn_forward_padded.1} parent=1 // pred_check
      _
    $region11: #{_ffnn_forward_padded.1} parent=1 // pred_check_branch
      %28 = sbr.rel (0) target = $region13
    $region12: #{_ffnn_forward_padded.1} parent=1 // pred_region
      _
    $region13: #{_ffnn_forward_padded.1} parent=1 // pred_fallthru
      _
    // Predicated region
    $region14: #{_ffnn_forward_padded.1} parent=1 // pred_check
      _
    $region15: #{_ffnn_forward_padded.1} parent=1 // pred_check_branch
      %30 = sbr.rel (0) target = $region17
    $region16: #{_ffnn_forward_padded.1} parent=1 // pred_region
      %s32 = ssub.s32 2048, 2048
      %33 = vsyncadd [#allocation7], %s32
      %s34 = sshll.u32 [#allocation6], 4
      %s35 = int_to_ptr.vmem [resolvable:$true] %s34
      %40 = dma.hbm_to_vmem [thread:$0]  %s3, 2048, %s35, [#allocation7], 128, 128, 8
    $region17: #{_ffnn_forward_padded.1} parent=1 // pred_fallthru
      _
    // Predicated region
    $region18: #{_ffnn_forward_padded.1} parent=1 // pred_check
      _
    $region19: #{_ffnn_forward_padded.1} parent=1 // pred_check_branch
      %42 = sbr.rel (0) target = $region21
    $region20: #{_ffnn_forward_padded.1} parent=1 // pred_region
      _
    $region21: #{_ffnn_forward_padded.1} parent=1 // pred_fallthru
      _
    // Predicated region
    $region22: #{_ffnn_forward_padded.1} parent=1 // pred_check
      _
    $region23: #{_ffnn_forward_padded.1} parent=1 // pred_check_branch
      %44 = sbr.rel (0) target = $region25
    $region24: #{_ffnn_forward_padded.1} parent=1 // pred_region
      %45 = dma.done [#allocation4], 2048
    $region25: #{_ffnn_forward_padded.1} parent=1 // pred_fallthru
      _
    // Predicated region
    $region26: #{_ffnn_forward_padded.1} parent=1 // pred_check
      _
    $region27: #{_ffnn_forward_padded.1} parent=1 // pred_check_branch
      %47 = sbr.rel (0) target = $region29
    $region28: #{_ffnn_forward_padded.1} parent=1 // pred_region
      %48 = dma.done [#allocation7], 2048
    $region29: #{_ffnn_forward_padded.1} parent=1 // pred_fallthru
      _
    %p49 = scmp.eq.s32.totalorder 0, 0
    // Predicated region
    $region30: #{_ffnn_forward_padded.1} parent=1 // pred_check
      %p50 = pneg %p49
    $region31: #{_ffnn_forward_padded.1} parent=1 // pred_check_branch
      %52 = sbr.rel (%p50) target = $region33
    $region32: #{_ffnn_forward_padded.1} parent=1 // pred_region
      %53 = vst [vmem:[#allocation2] sm:$0xff] 0.0
    $region33: #{_ffnn_forward_padded.1} parent=1 // pred_fallthru
      _
    %v54 = vld [vmem:[%s0] sm:$0xff]
    %v55 = vld [vmem:[#allocation3] sm:$0xff]
    %v56 = vld [vmem:[#allocation3 + $0x8] sm:$0xff]
    %v57 = vld [vmem:[#allocation3 + $0x10] sm:$0xff]
    %v58 = vld [vmem:[#allocation3 + $0x18] sm:$0xff]
    %v59 = vld [vmem:[#allocation3 + $0x20] sm:$0xff]
    %v60 = vld [vmem:[#allocation3 + $0x28] sm:$0xff]
    %v61 = vld [vmem:[#allocation3 + $0x30] sm:$0xff]
    %v62 = vld [vmem:[#allocation3 + $0x38] sm:$0xff]
    %v63 = vld [vmem:[#allocation3 + $0x40] sm:$0xff]
    %v64 = vld [vmem:[#allocation3 + $0x48] sm:$0xff]
    %v65 = vld [vmem:[#allocation3 + $0x50] sm:$0xff]
    %v66 = vld [vmem:[#allocation3 + $0x58] sm:$0xff]
    %v67 = vld [vmem:[#allocation3 + $0x60] sm:$0xff]
    %v68 = vld [vmem:[#allocation3 + $0x68] sm:$0xff]
    %v69 = vld [vmem:[#allocation3 + $0x70] sm:$0xff]
    %v70 = vld [vmem:[#allocation3 + $0x78] sm:$0xff]
    %v71 = vld [vmem:[%s2] sm:$0x1]
    %v73 = vlaneseq
    %v74 = vshrl.u32 %v73, 7
    %v75 = vsub.s32 0, %v74
    %v76 = vrot.slane %v71, %v75
    %78 = vmatprep.subr.mxu0 0.0
    %79 = vmatpush1.msra.mxu0 %v70
    %80 = vmatprep.subr.mxu0 0.0
    %81 = vmatpush1.msra.mxu0 %v69
    %82 = vmatprep.subr.mxu0 0.0
    %83 = vmatpush1.msra.mxu0 %v68
    %84 = vmatprep.subr.mxu0 0.0
    %85 = vmatpush1.msra.mxu0 %v67
    %86 = vmatprep.subr.mxu0 0.0
    %87 = vmatpush1.msra.mxu0 %v66
    %88 = vmatprep.subr.mxu0 0.0
    %89 = vmatpush1.msra.mxu0 %v65
    %90 = vmatprep.subr.mxu0 0.0
    %91 = vmatpush1.msra.mxu0 %v64
    %92 = vmatprep.subr.mxu0 0.0
    %93 = vmatpush1.msra.mxu0 %v63
    %94 = vmatprep.subr.mxu0 0.0
    %95 = vmatpush1.msra.mxu0 %v62
    %96 = vmatprep.subr.mxu0 0.0
    %97 = vmatpush1.msra.mxu0 %v61
    %98 = vmatprep.subr.mxu0 0.0
    %99 = vmatpush1.msra.mxu0 %v60
    %100 = vmatprep.subr.mxu0 0.0
    %101 = vmatpush1.msra.mxu0 %v59
    %102 = vmatprep.subr.mxu0 0.0
    %103 = vmatpush1.msra.mxu0 %v58
    %104 = vmatprep.subr.mxu0 0.0
    %105 = vmatpush1.msra.mxu0 %v57
    %106 = vmatprep.subr.mxu0 0.0
    %107 = vmatpush1.msra.mxu0 %v56
    %108 = vmatprep.subr.mxu0 0.0
    %109 = vmatpush1.msra.mxu0 %v55
    %110 = vmatprep.subr.mxu0 0.0
    %111 = vmatpush2.msra.mxu0 0.0
    %112 = vmatprep.subr.mxu0 0.0
    %113 = vmatpush2.msra.mxu0 0.0
    %114 = vmatprep.subr.mxu0 0.0
    %115 = vmatpush2.msra.mxu0 0.0
    %116 = vmatprep.subr.mxu0 0.0
    %117 = vmatpush2.msra.mxu0 0.0
    %118 = vmatprep.subr.mxu0 0.0
    %119 = vmatpush2.msra.mxu0 0.0
    %120 = vmatprep.subr.mxu0 0.0
    %121 = vmatpush2.msra.mxu0 0.0
    %122 = vmatprep.subr.mxu0 0.0
    %123 = vmatpush2.msra.mxu0 0.0
    %124 = vmatprep.subr.mxu0 0.0
    %125 = vmatpush2.msra.mxu0 0.0
    %126 = vmatprep.subr.mxu0 0.0
    %127 = vmatpush2.msra.mxu0 0.0
    %128 = vmatprep.subr.mxu0 0.0
    %129 = vmatpush2.msra.mxu0 0.0
    %130 = vmatprep.subr.mxu0 0.0
    %131 = vmatpush2.msra.mxu0 0.0
    %132 = vmatprep.subr.mxu0 0.0
    %133 = vmatpush2.msra.mxu0 0.0
    %134 = vmatprep.subr.mxu0 0.0
    %135 = vmatpush2.msra.mxu0 0.0
    %136 = vmatprep.subr.mxu0 0.0
    %137 = vmatpush2.msra.mxu0 0.0
    %138 = vmatprep.subr.mxu0 0.0
    %139 = vmatpush2.msra.mxu0 0.0
    %140 = vmatprep.subr.mxu0 0.0
    %141 = vmatpush2.msra.mxu0 0.0
    %142 = vmatprep.mubr.f32.mxu0 0.0
    %143 = vmatmul.mubr.f32.gmra.mxu0 %v54
    %v144 = vpop.f32.mrf.mxu0
    %v145 = vadd.f32 %v76, %v144
    %v146 = vpop.f32.mrf.mxu0
    %147 = vdwg.mxu0
    %v148 = vmax.f32 %v145, 0.0
    %v149 = vld [vmem:[#allocation2] sm:$0xff]
    %v150 = vld [vmem:[#allocation6] sm:$0xff]
    %v151 = vld [vmem:[#allocation6 + $0x8] sm:$0xff]
    %v152 = vld [vmem:[#allocation6 + $0x10] sm:$0xff]
    %v153 = vld [vmem:[#allocation6 + $0x18] sm:$0xff]
    %v154 = vld [vmem:[#allocation6 + $0x20] sm:$0xff]
    %v155 = vld [vmem:[#allocation6 + $0x28] sm:$0xff]
    %v156 = vld [vmem:[#allocation6 + $0x30] sm:$0xff]
    %v157 = vld [vmem:[#allocation6 + $0x38] sm:$0xff]
    %v158 = vld [vmem:[#allocation6 + $0x40] sm:$0xff]
    %v159 = vld [vmem:[#allocation6 + $0x48] sm:$0xff]
    %v160 = vld [vmem:[#allocation6 + $0x50] sm:$0xff]
    %v161 = vld [vmem:[#allocation6 + $0x58] sm:$0xff]
    %v162 = vld [vmem:[#allocation6 + $0x60] sm:$0xff]
    %v163 = vld [vmem:[#allocation6 + $0x68] sm:$0xff]
    %v164 = vld [vmem:[#allocation6 + $0x70] sm:$0xff]
    %v165 = vld [vmem:[#allocation6 + $0x78] sm:$0xff]
    %166 = vmatprep.subr.mxu0 0.0
    %167 = vmatpush1.msra.mxu0 %v165
    %168 = vmatprep.subr.mxu0 0.0
    %169 = vmatpush1.msra.mxu0 %v164
    %170 = vmatprep.subr.mxu0 0.0
    %171 = vmatpush1.msra.mxu0 %v163
    %172 = vmatprep.subr.mxu0 0.0
    %173 = vmatpush1.msra.mxu0 %v162
    %174 = vmatprep.subr.mxu0 0.0
    %175 = vmatpush1.msra.mxu0 %v161
    %176 = vmatprep.subr.mxu0 0.0
    %177 = vmatpush1.msra.mxu0 %v160
    %178 = vmatprep.subr.mxu0 0.0
    %179 = vmatpush1.msra.mxu0 %v159
    %180 = vmatprep.subr.mxu0 0.0
    %181 = vmatpush1.msra.mxu0 %v158
    %182 = vmatprep.subr.mxu0 0.0
    %183 = vmatpush1.msra.mxu0 %v157
    %184 = vmatprep.subr.mxu0 0.0
    %185 = vmatpush1.msra.mxu0 %v156
    %186 = vmatprep.subr.mxu0 0.0
    %187 = vmatpush1.msra.mxu0 %v155
    %188 = vmatprep.subr.mxu0 0.0
    %189 = vmatpush1.msra.mxu0 %v154
    %190 = vmatprep.subr.mxu0 0.0
    %191 = vmatpush1.msra.mxu0 %v153
    %192 = vmatprep.subr.mxu0 0.0
    %193 = vmatpush1.msra.mxu0 %v152
    %194 = vmatprep.subr.mxu0 0.0
    %195 = vmatpush1.msra.mxu0 %v151
    %196 = vmatprep.subr.mxu0 0.0
    %197 = vmatpush1.msra.mxu0 %v150
    %198 = vmatprep.subr.mxu0 0.0
    %199 = vmatpush2.msra.mxu0 0.0
    %200 = vmatprep.subr.mxu0 0.0
    %201 = vmatpush2.msra.mxu0 0.0
    %202 = vmatprep.subr.mxu0 0.0
    %203 = vmatpush2.msra.mxu0 0.0
    %204 = vmatprep.subr.mxu0 0.0
    %205 = vmatpush2.msra.mxu0 0.0
    %206 = vmatprep.subr.mxu0 0.0
    %207 = vmatpush2.msra.mxu0 0.0
    %208 = vmatprep.subr.mxu0 0.0
    %209 = vmatpush2.msra.mxu0 0.0
    %210 = vmatprep.subr.mxu0 0.0
    %211 = vmatpush2.msra.mxu0 0.0
    %212 = vmatprep.subr.mxu0 0.0
    %213 = vmatpush2.msra.mxu0 0.0
    %214 = vmatprep.subr.mxu0 0.0
    %215 = vmatpush2.msra.mxu0 0.0
    %216 = vmatprep.subr.mxu0 0.0
    %217 = vmatpush2.msra.mxu0 0.0
    %218 = vmatprep.subr.mxu0 0.0
    %219 = vmatpush2.msra.mxu0 0.0
    %220 = vmatprep.subr.mxu0 0.0
    %221 = vmatpush2.msra.mxu0 0.0
    %222 = vmatprep.subr.mxu0 0.0
    %223 = vmatpush2.msra.mxu0 0.0
    %224 = vmatprep.subr.mxu0 0.0
    %225 = vmatpush2.msra.mxu0 0.0
    %226 = vmatprep.subr.mxu0 0.0
    %227 = vmatpush2.msra.mxu0 0.0
    %228 = vmatprep.subr.mxu0 0.0
    %229 = vmatpush2.msra.mxu0 0.0
    %230 = vmatprep.mubr.f32.mxu0 0.0
    %231 = vmatmul.mubr.f32.gmra.mxu0 %v148
    %v232 = vpop.f32.mrf.mxu0
    %v233 = vadd.f32 0.0, %v232
    %v234 = vpop.f32.mrf.mxu0
    %235 = vdwg.mxu0
    %v236 = vadd.f32 %v149, %v233
    %237 = vst [vmem:[#allocation2] sm:$0xff] %v236
    // Predicated region
    $region34: #{_ffnn_forward_padded.1} parent=1 // pred_check
      %p238 = pneg %p49
    $region35: #{_ffnn_forward_padded.1} parent=1 // pred_check_branch
      %240 = sbr.rel (%p238) target = $region37
    $region36: #{_ffnn_forward_padded.1} parent=1 // pred_region
      %v241 = vld [vmem:[#allocation2] sm:$0xff]
      %v242 = vld [vmem:[%s4] sm:$0x1]
      %v244 = vlaneseq
      %v245 = vshrl.u32 %v244, 7
      %v246 = vsub.s32 0, %v245
      %v247 = vrot.slane %v242, %v246
      %v249 = vadd.f32 %v241, %v247
      %250 = vst [vmem:[#allocation8] sm:$0xff] %v249
    $region37: #{_ffnn_forward_padded.1} parent=1 // pred_fallthru
      _
    // Predicated region
    $region38: #{_ffnn_forward_padded.1} parent=1 // pred_check
      _
    $region39: #{_ffnn_forward_padded.1} parent=1 // pred_check_branch
      %252 = sbr.rel (0) target = $region41
    $region40: #{_ffnn_forward_padded.1} parent=1 // pred_region
      %s254 = ssub.s32 128, 128
      %255 = vsyncadd [#allocation5], %s254
      %s257 = sshll.u32 [#allocation8], 4
      %s258 = int_to_ptr.vmem [resolvable:$true] %s257
      %260 = dma.vmem_to_hbm [thread:$0]  %s258, 128, %s5, [#allocation5]
    $region41: #{_ffnn_forward_padded.1} parent=1 // pred_fallthru
      _
    // Predicated region
    $region42: #{_ffnn_forward_padded.1} parent=1 // pred_check
      _
    $region43: #{_ffnn_forward_padded.1} parent=1 // pred_check_branch
      %262 = sbr.rel (0) target = $region45
    $region44: #{_ffnn_forward_padded.1} parent=1 // pred_region
      %263 = dma.done [#allocation5], 128
    $region45: #{_ffnn_forward_padded.1} parent=1 // pred_fallthru
      _
    %264 = vsyncpa [#allocation4], 1
    %265 = vsyncpa [#allocation7], 1
    %266 = vsyncpa [#allocation5], 1

</llo_original>
